<compile_context>
chip_gen: v7x
topology: tpu7x:2x2x1
jax: 0.10.0
libtpu: 0.0.40
codegen_flags: <defaults>
</compile_context>

<pallas_src>
import functools

import jax
import jax.numpy as jnp
from jax.experimental import pallas as pl
from jax.experimental.pallas import tpu as pltpu

BN_EPS = 1e-5
LANE = 128


def _round_up(v, m):
    return (v + m - 1) // m * m


# ---------------------------------------------------------------------------
# Kernel
# ---------------------------------------------------------------------------
def _mlp_kernel(n_hidden_layers, use_sigmoid,
                x_ref, w_in_ref, gb_in_ref, w_h_ref, gb_h_ref,
                w_out_ref, b_out_ref, o_ref):
    def linear_bn_relu(h, w_bf16, gb):
        # bf16 x bf16 -> f32 accumulate on the MXU.  No Linear bias: it is
        # exactly cancelled by the BatchNorm mean subtraction below.
        h = jnp.dot(h.astype(jnp.bfloat16), w_bf16,
                    preferred_element_type=jnp.float32)
        # Batch statistics (train-mode BN, biased variance) in f32.
        mean = jnp.mean(h, axis=0, keepdims=True)
        var = jnp.mean(h * h, axis=0, keepdims=True) - mean * mean
        gamma = gb[0:1, :]
        beta = gb[1:2, :]
        # Fold BN into one per-feature scale/shift (row math is cheap; rsqrt -> EUP).
        scale = gamma * jax.lax.rsqrt(var + BN_EPS)
        shift = beta - mean * scale
        return jnp.maximum(h * scale + shift, 0.0)

    # Input block
    h = linear_bn_relu(x_ref[...], w_in_ref[...], gb_in_ref[...])

    # Hidden blocks (static unroll; stacked weights indexed statically)
    for i in range(n_hidden_layers):
        h = linear_bn_relu(h, w_h_ref[i], gb_h_ref[i])

    # Output Linear (keeps its bias), lane-dense (padded) store.
    out = jnp.dot(h.astype(jnp.bfloat16), w_out_ref[...],
                  preferred_element_type=jnp.float32) + b_out_ref[...]
    if use_sigmoid:
        out = jax.nn.sigmoid(out)
    o_ref[...] = out.astype(o_ref.dtype)


# ---------------------------------------------------------------------------
# Wrapper
# ---------------------------------------------------------------------------
def simple_nn_forward(x, kparams, n_hidden_layers, output_dim, sigmoid=False):
    """Fused forward pass. `kparams` come from `prepare_kernel_params`."""
    w_in, gb_in, w_h, gb_h, w_out, b_out = kparams
    batch = x.shape[0]
    in_pad = w_in.shape[0]
    out_pad = w_out.shape[1]

    # Lane-pad the input features (exact: padded weight rows are zero).
    if x.shape[1] != in_pad:
        x = jnp.pad(x, ((0, 0), (0, in_pad - x.shape[1])))

    args = (x, w_in, gb_in, w_h, gb_h, w_out, b_out)
    vmem = pl.BlockSpec(memory_space=pltpu.MemorySpace.VMEM)
    kernel = functools.partial(_mlp_kernel, n_hidden_layers, sigmoid)

    out = pl.pallas_call(
        kernel,
        out_shape=jax.ShapeDtypeStruct((batch, out_pad), jnp.float32),
        in_specs=[vmem] * len(args),
        out_specs=vmem,
        compiler_params=pltpu.CompilerParams(vmem_limit_bytes=32 * 1024 * 1024),
    )(*args)
    return out[:, :output_dim]


# ---------------------------------------------------------------------------
# Parameter handling
# ---------------------------------------------------------------------------
def init_raw_params(key, input_dim, output_dim, n_hidden_layers, n_nodes):
    """f32 params in the PyTorch layout (W stored as [in, out] so y = x @ W + b)."""
    ks = jax.random.split(key, 4 + 2 * max(n_hidden_layers, 1))
    s_in = 1.0 / (input_dim ** 0.5)
    s_h = 1.0 / (n_nodes ** 0.5)

    w_in = jax.random.uniform(ks[0], (input_dim, n_nodes), jnp.float32, -s_in, s_in)
    b_in = jax.random.uniform(ks[1], (1, n_nodes), jnp.float32, -s_in, s_in)
    g_in = jnp.ones((1, n_nodes), jnp.float32)
    be_in = jnp.zeros((1, n_nodes), jnp.float32)

    w_h, b_h, g_h, be_h = [], [], [], []
    for i in range(n_hidden_layers):
        w_h.append(jax.random.uniform(ks[2 + 2 * i], (n_nodes, n_nodes),
                                      jnp.float32, -s_h, s_h))
        b_h.append(jax.random.uniform(ks[3 + 2 * i], (1, n_nodes),
                                      jnp.float32, -s_h, s_h))
        g_h.append(jnp.ones((1, n_nodes), jnp.float32))
        be_h.append(jnp.zeros((1, n_nodes), jnp.float32))

    w_out = jax.random.uniform(ks[-2], (n_nodes, output_dim), jnp.float32, -s_h, s_h)
    b_out = jax.random.uniform(ks[-1], (1, output_dim), jnp.float32, -s_h, s_h)

    return dict(w_in=w_in, b_in=b_in, g_in=g_in, be_in=be_in,
                w_h=w_h, b_h=b_h, g_h=g_h, be_h=be_h,
                w_out=w_out, b_out=b_out)


def prepare_kernel_params(raw, n_hidden_layers, lane=LANE):
    """Pad feature dims to multiples of 128, pack gamma/beta, cast weights to bf16.

    Linear biases before BatchNorm are intentionally dropped (they are exactly
    cancelled by BN's mean subtraction).  All padding is exact (zeros for weights
    and beta, ones for gamma) so the unpadded output columns are unchanged.
    """
    input_dim, n_nodes = raw["w_in"].shape
    output_dim = raw["w_out"].shape[1]
    in_pad = _round_up(input_dim, lane)
    n_pad = _round_up(n_nodes, lane)
    out_pad = _round_up(output_dim, lane)

    def pad2(a, rows, cols):
        return jnp.pad(a, ((0, rows - a.shape[0]), (0, cols - a.shape[1])))

    def pad_row(a, cols, value):
        return jnp.pad(a, ((0, 0), (0, cols - a.shape[1])), constant_values=value)

    def pack_gb(g, be):
        return jnp.concatenate([pad_row(g, n_pad, 1.0),
                                pad_row(be, n_pad, 0.0)], axis=0)  # (2, n_pad)

    w_in = pad2(raw["w_in"], in_pad, n_pad).astype(jnp.bfloat16)
    gb_in = pack_gb(raw["g_in"], raw["be_in"])

    if n_hidden_layers > 0:
        w_h = jnp.stack([pad2(w, n_pad, n_pad) for w in raw["w_h"]]).astype(jnp.bfloat16)
        gb_h = jnp.stack([pack_gb(g, be) for g, be in zip(raw["g_h"], raw["be_h"])])
    else:
        w_h = jnp.zeros((1, n_pad, n_pad), jnp.bfloat16)
        gb_h = jnp.zeros((1, 2, n_pad), jnp.float32)

    w_out = pad2(raw["w_out"], n_pad, out_pad).astype(jnp.bfloat16)
    b_out = pad_row(raw["b_out"], out_pad, 0.0)

    return (w_in, gb_in, w_h, gb_h, w_out, b_out)


# ---------------------------------------------------------------------------
# References
# ---------------------------------------------------------------------------
def reference_forward(x, raw, n_hidden_layers, sigmoid=False):
    """Pure-JAX f32 reference with the original PyTorch train-mode semantics."""
    def block(h, w, b, g, be):
        h = h @ w + b
        mean = h.mean(axis=0, keepdims=True)
        var = ((h - mean) ** 2).mean(axis=0, keepdims=True)
        h = (h - mean) / jnp.sqrt(var + BN_EPS) * g + be
        return jnp.maximum(h, 0.0)

    h = block(x, raw["w_in"], raw["b_in"], raw["g_in"], raw["be_in"])
    for i in range(n_hidden_layers):
        h = block(h, raw["w_h"][i], raw["b_h"][i], raw["g_h"][i], raw["be_h"][i])
    out = h @ raw["w_out"] + raw["b_out"]
    if sigmoid:
        out = jax.nn.sigmoid(out)
    return out


def matched_reference(x, kparams, n_hidden_layers, output_dim, sigmoid=False):
    """Pure-JAX reference that mirrors the kernel math exactly (bf16 matmuls,
    folded BN, dropped pre-BN biases) for a tight-tolerance check."""
    w_in, gb_in, w_h, gb_h, w_out, b_out = kparams
    in_pad = w_in.shape[0]
    if x.shape[1] != in_pad:
        x = jnp.pad(x, ((0, 0), (0, in_pad - x.shape[1])))

    def block(h, w, gb):
        h = jnp.dot(h.astype(jnp.bfloat16), w, preferred_element_type=jnp.float32)
        mean = jnp.mean(h, axis=0, keepdims=True)
        var = jnp.mean(h * h, axis=0, keepdims=True) - mean * mean
        scale = gb[0:1, :] * jax.lax.rsqrt(var + BN_EPS)
        shift = gb[1:2, :] - mean * scale
        return jnp.maximum(h * scale + shift, 0.0)

    h = block(x, w_in, gb_in)
    for i in range(n_hidden_layers):
        h = block(h, w_h[i], gb_h[i])
    out = jnp.dot(h.astype(jnp.bfloat16), w_out,
                  preferred_element_type=jnp.float32) + b_out
    if sigmoid:
        out = jax.nn.sigmoid(out)
    return out[:, :output_dim]


# ---------------------------------------------------------------------------
# Demo / self-test
# ---------------------------------------------------------------------------
if __name__ == "__main__":
    batch = 64            # multiple of 8/16 sublanes
    input_dim = 16
    output_dim = 4
    n_hidden_layers = 2
    n_nodes = 128         # lane-dense hidden width
    use_sigmoid = False   # module default

    key = jax.random.PRNGKey(0)
    kx, kp = jax.random.split(key)
    x = jax.random.normal(kx, (batch, input_dim), dtype=jnp.float32)

    raw = init_raw_params(kp, input_dim, output_dim, n_hidden_layers, n_nodes)
    kparams = prepare_kernel_params(raw, n_hidden_layers)

    out = simple_nn_forward(x, kparams, n_hidden_layers, output_dim,
                            sigmoid=use_sigmoid)
    out = jax.block_until_ready(out)
    assert out.shape == (batch, output_dim)

    # Tight check against a reference that replicates the kernel's math exactly.
    ref_match = matched_reference(x, kparams, n_hidden_layers, output_dim,
                                  sigmoid=use_sigmoid)
    assert jnp.allclose(out, ref_match, atol=1e-2, rtol=1e-2), \
        "kernel mismatch vs matched-math reference"

    # Looser check against the full-f32 PyTorch-semantics reference
    # (difference is only bf16 matmul rounding).
    ref_sem = reference_forward(x, raw, n_hidden_layers, sigmoid=use_sigmoid)
    assert jnp.allclose(out, ref_sem, atol=5e-2, rtol=5e-2), \
        "kernel mismatch vs PyTorch-semantics reference"

    print("KERNEL_OK")
</pallas_src>

<mosaic_0001>
module attributes {stable_mosaic.version = 11 : i64} {
  func.func @_mlp_kernel(%arg0: memref<64x128xf32, #tpu.memory_space<vmem>>, %arg1: memref<128x128xbf16, #tpu.memory_space<vmem>>, %arg2: memref<2x128xf32, #tpu.memory_space<vmem>>, %arg3: memref<2x128x128xbf16, #tpu.memory_space<vmem>>, %arg4: memref<2x2x128xf32, #tpu.memory_space<vmem>>, %arg5: memref<128x128xbf16, #tpu.memory_space<vmem>>, %arg6: memref<1x128xf32, #tpu.memory_space<vmem>>, %arg7: memref<64x128xf32, #tpu.memory_space<vmem>>) attributes {dimension_semantics = [], scalar_prefetch = 0 : i64, scratch_operands = 0 : i64, tpu.core_type = #tpu.core_type<tc>} {
    %c0 = arith.constant 0 : index
    %c0_0 = arith.constant 0 : index
    %0 = vector.load %arg0[%c0, %c0_0] : memref<64x128xf32, #tpu.memory_space<vmem>>, vector<64x128xf32>
    %c0_1 = arith.constant 0 : index
    %c0_2 = arith.constant 0 : index
    %1 = vector.load %arg1[%c0_1, %c0_2] : memref<128x128xbf16, #tpu.memory_space<vmem>>, vector<128x128xbf16>
    %c0_3 = arith.constant 0 : index
    %c0_4 = arith.constant 0 : index
    %2 = vector.load %arg2[%c0_3, %c0_4] : memref<2x128xf32, #tpu.memory_space<vmem>>, vector<2x128xf32>
    %3 = arith.truncf %0 : vector<64x128xf32> to vector<64x128xbf16>
    %cst = arith.constant dense<0.000000e+00> : vector<64x128xf32>
    %4 = tpu.matmul %3, %1, %cst {dimension_numbers = #tpu.dot_dimension_numbers<[1], [0], [0], [1], [0, 0, 1, 1], [], []>} : vector<64x128xbf16>, vector<128x128xbf16>, vector<64x128xf32> -> vector<64x128xf32>
    %cst_5 = arith.constant dense<0.000000e+00> : vector<128xf32>
    %5 = vector.multi_reduction <add>, %4, %cst_5 [0] : vector<64x128xf32> to vector<128xf32>
    %6 = vector.shape_cast %5 : vector<128xf32> to vector<1x128xf32>
    %cst_6 = arith.constant 6.400000e+01 : f32
    %7 = vector.broadcast %cst_6 : f32 to vector<1x128xf32>
    %8 = arith.divf %6, %7 : vector<1x128xf32>
    %9 = arith.mulf %4, %4 : vector<64x128xf32>
    %cst_7 = arith.constant dense<0.000000e+00> : vector<128xf32>
    %10 = vector.multi_reduction <add>, %9, %cst_7 [0] : vector<64x128xf32> to vector<128xf32>
    %11 = vector.shape_cast %10 : vector<128xf32> to vector<1x128xf32>
    %cst_8 = arith.constant 6.400000e+01 : f32
    %12 = vector.broadcast %cst_8 : f32 to vector<1x128xf32>
    %13 = arith.divf %11, %12 : vector<1x128xf32>
    %14 = arith.mulf %8, %8 : vector<1x128xf32>
    %15 = arith.subf %13, %14 : vector<1x128xf32>
    %16 = vector.extract_strided_slice %2 {offsets = [0, 0], sizes = [1, 128], strides = [1, 1]} : vector<2x128xf32> to vector<1x128xf32>
    %17 = vector.extract_strided_slice %2 {offsets = [1, 0], sizes = [1, 128], strides = [1, 1]} : vector<2x128xf32> to vector<1x128xf32>
    %cst_9 = arith.constant 9.99999974E-6 : f32
    %18 = vector.broadcast %cst_9 : f32 to vector<1x128xf32>
    %19 = arith.addf %15, %18 : vector<1x128xf32>
    %20 = math.rsqrt %19 : vector<1x128xf32>
    %21 = arith.mulf %16, %20 : vector<1x128xf32>
    %22 = arith.mulf %8, %21 : vector<1x128xf32>
    %23 = arith.subf %17, %22 : vector<1x128xf32>
    %24 = vector.broadcast %21 : vector<1x128xf32> to vector<64x128xf32>
    %25 = arith.mulf %4, %24 : vector<64x128xf32>
    %26 = vector.broadcast %23 : vector<1x128xf32> to vector<64x128xf32>
    %27 = arith.addf %25, %26 : vector<64x128xf32>
    %cst_10 = arith.constant 0.000000e+00 : f32
    %28 = vector.broadcast %cst_10 : f32 to vector<64x128xf32>
    %29 = arith.maximumf %27, %28 : vector<64x128xf32>
    %c0_11 = arith.constant 0 : index
    %c0_12 = arith.constant 0 : index
    %c0_13 = arith.constant 0 : index
    %30 = vector.load %arg3[%c0_11, %c0_12, %c0_13] : memref<2x128x128xbf16, #tpu.memory_space<vmem>>, vector<1x128x128xbf16>
    %31 = vector.shape_cast %30 : vector<1x128x128xbf16> to vector<128x128xbf16>
    %c0_14 = arith.constant 0 : index
    %c0_15 = arith.constant 0 : index
    %c0_16 = arith.constant 0 : index
    %32 = vector.load %arg4[%c0_14, %c0_15, %c0_16] : memref<2x2x128xf32, #tpu.memory_space<vmem>>, vector<1x2x128xf32>
    %33 = vector.shape_cast %32 : vector<1x2x128xf32> to vector<2x128xf32>
    %34 = arith.truncf %29 : vector<64x128xf32> to vector<64x128xbf16>
    %cst_17 = arith.constant dense<0.000000e+00> : vector<64x128xf32>
    %35 = tpu.matmul %34, %31, %cst_17 {dimension_numbers = #tpu.dot_dimension_numbers<[1], [0], [0], [1], [0, 0, 1, 1], [], []>} : vector<64x128xbf16>, vector<128x128xbf16>, vector<64x128xf32> -> vector<64x128xf32>
    %cst_18 = arith.constant dense<0.000000e+00> : vector<128xf32>
    %36 = vector.multi_reduction <add>, %35, %cst_18 [0] : vector<64x128xf32> to vector<128xf32>
    %37 = vector.shape_cast %36 : vector<128xf32> to vector<1x128xf32>
    %cst_19 = arith.constant 6.400000e+01 : f32
    %38 = vector.broadcast %cst_19 : f32 to vector<1x128xf32>
    %39 = arith.divf %37, %38 : vector<1x128xf32>
    %40 = arith.mulf %35, %35 : vector<64x128xf32>
    %cst_20 = arith.constant dense<0.000000e+00> : vector<128xf32>
    %41 = vector.multi_reduction <add>, %40, %cst_20 [0] : vector<64x128xf32> to vector<128xf32>
    %42 = vector.shape_cast %41 : vector<128xf32> to vector<1x128xf32>
    %cst_21 = arith.constant 6.400000e+01 : f32
    %43 = vector.broadcast %cst_21 : f32 to vector<1x128xf32>
    %44 = arith.divf %42, %43 : vector<1x128xf32>
    %45 = arith.mulf %39, %39 : vector<1x128xf32>
    %46 = arith.subf %44, %45 : vector<1x128xf32>
    %47 = vector.extract_strided_slice %33 {offsets = [0, 0], sizes = [1, 128], strides = [1, 1]} : vector<2x128xf32> to vector<1x128xf32>
    %48 = vector.extract_strided_slice %33 {offsets = [1, 0], sizes = [1, 128], strides = [1, 1]} : vector<2x128xf32> to vector<1x128xf32>
    %cst_22 = arith.constant 9.99999974E-6 : f32
    %49 = vector.broadcast %cst_22 : f32 to vector<1x128xf32>
    %50 = arith.addf %46, %49 : vector<1x128xf32>
    %51 = math.rsqrt %50 : vector<1x128xf32>
    %52 = arith.mulf %47, %51 : vector<1x128xf32>
    %53 = arith.mulf %39, %52 : vector<1x128xf32>
    %54 = arith.subf %48, %53 : vector<1x128xf32>
    %55 = vector.broadcast %52 : vector<1x128xf32> to vector<64x128xf32>
    %56 = arith.mulf %35, %55 : vector<64x128xf32>
    %57 = vector.broadcast %54 : vector<1x128xf32> to vector<64x128xf32>
    %58 = arith.addf %56, %57 : vector<64x128xf32>
    %cst_23 = arith.constant 0.000000e+00 : f32
    %59 = vector.broadcast %cst_23 : f32 to vector<64x128xf32>
    %60 = arith.maximumf %58, %59 : vector<64x128xf32>
    %c1 = arith.constant 1 : index
    %c0_24 = arith.constant 0 : index
    %c0_25 = arith.constant 0 : index
    %61 = vector.load %arg3[%c1, %c0_24, %c0_25] : memref<2x128x128xbf16, #tpu.memory_space<vmem>>, vector<1x128x128xbf16>
    %62 = vector.shape_cast %61 : vector<1x128x128xbf16> to vector<128x128xbf16>
    %c1_26 = arith.constant 1 : index
    %c0_27 = arith.constant 0 : index
    %c0_28 = arith.constant 0 : index
    %63 = vector.load %arg4[%c1_26, %c0_27, %c0_28] : memref<2x2x128xf32, #tpu.memory_space<vmem>>, vector<1x2x128xf32>
    %64 = vector.shape_cast %63 : vector<1x2x128xf32> to vector<2x128xf32>
    %65 = arith.truncf %60 : vector<64x128xf32> to vector<64x128xbf16>
    %cst_29 = arith.constant dense<0.000000e+00> : vector<64x128xf32>
    %66 = tpu.matmul %65, %62, %cst_29 {dimension_numbers = #tpu.dot_dimension_numbers<[1], [0], [0], [1], [0, 0, 1, 1], [], []>} : vector<64x128xbf16>, vector<128x128xbf16>, vector<64x128xf32> -> vector<64x128xf32>
    %cst_30 = arith.constant dense<0.000000e+00> : vector<128xf32>
    %67 = vector.multi_reduction <add>, %66, %cst_30 [0] : vector<64x128xf32> to vector<128xf32>
    %68 = vector.shape_cast %67 : vector<128xf32> to vector<1x128xf32>
    %cst_31 = arith.constant 6.400000e+01 : f32
    %69 = vector.broadcast %cst_31 : f32 to vector<1x128xf32>
    %70 = arith.divf %68, %69 : vector<1x128xf32>
    %71 = arith.mulf %66, %66 : vector<64x128xf32>
    %cst_32 = arith.constant dense<0.000000e+00> : vector<128xf32>
    %72 = vector.multi_reduction <add>, %71, %cst_32 [0] : vector<64x128xf32> to vector<128xf32>
    %73 = vector.shape_cast %72 : vector<128xf32> to vector<1x128xf32>
    %cst_33 = arith.constant 6.400000e+01 : f32
    %74 = vector.broadcast %cst_33 : f32 to vector<1x128xf32>
    %75 = arith.divf %73, %74 : vector<1x128xf32>
    %76 = arith.mulf %70, %70 : vector<1x128xf32>
    %77 = arith.subf %75, %76 : vector<1x128xf32>
    %78 = vector.extract_strided_slice %64 {offsets = [0, 0], sizes = [1, 128], strides = [1, 1]} : vector<2x128xf32> to vector<1x128xf32>
    %79 = vector.extract_strided_slice %64 {offsets = [1, 0], sizes = [1, 128], strides = [1, 1]} : vector<2x128xf32> to vector<1x128xf32>
    %cst_34 = arith.constant 9.99999974E-6 : f32
    %80 = vector.broadcast %cst_34 : f32 to vector<1x128xf32>
    %81 = arith.addf %77, %80 : vector<1x128xf32>
    %82 = math.rsqrt %81 : vector<1x128xf32>
    %83 = arith.mulf %78, %82 : vector<1x128xf32>
    %84 = arith.mulf %70, %83 : vector<1x128xf32>
    %85 = arith.subf %79, %84 : vector<1x128xf32>
    %86 = vector.broadcast %83 : vector<1x128xf32> to vector<64x128xf32>
    %87 = arith.mulf %66, %86 : vector<64x128xf32>
    %88 = vector.broadcast %85 : vector<1x128xf32> to vector<64x128xf32>
    %89 = arith.addf %87, %88 : vector<64x128xf32>
    %cst_35 = arith.constant 0.000000e+00 : f32
    %90 = vector.broadcast %cst_35 : f32 to vector<64x128xf32>
    %91 = arith.maximumf %89, %90 : vector<64x128xf32>
    %92 = arith.truncf %91 : vector<64x128xf32> to vector<64x128xbf16>
    %c0_36 = arith.constant 0 : index
    %c0_37 = arith.constant 0 : index
    %93 = vector.load %arg5[%c0_36, %c0_37] : memref<128x128xbf16, #tpu.memory_space<vmem>>, vector<128x128xbf16>
    %cst_38 = arith.constant dense<0.000000e+00> : vector<64x128xf32>
    %94 = tpu.matmul %92, %93, %cst_38 {dimension_numbers = #tpu.dot_dimension_numbers<[1], [0], [0], [1], [0, 0, 1, 1], [], []>} : vector<64x128xbf16>, vector<128x128xbf16>, vector<64x128xf32> -> vector<64x128xf32>
    %c0_39 = arith.constant 0 : index
    %c0_40 = arith.constant 0 : index
    %95 = vector.load %arg6[%c0_39, %c0_40] : memref<1x128xf32, #tpu.memory_space<vmem>>, vector<1x128xf32>
    %96 = vector.broadcast %95 : vector<1x128xf32> to vector<64x128xf32>
    %97 = arith.addf %94, %96 : vector<64x128xf32>
    %c0_41 = arith.constant 0 : index
    %c0_42 = arith.constant 0 : index
    %98 = vector.load %arg7[%c0_41, %c0_42] : memref<64x128xf32, #tpu.memory_space<vmem>>, vector<64x128xf32>
    tpu.vector_store %arg7[%c0_41, %c0_42], %97 {strides = array<i32>} : memref<64x128xf32, #tpu.memory_space<vmem>>, vector<64x128xf32>,
    return
  }
}

</mosaic_0001>

<llo_original>
// kernel: tpu_custom_call.1
$region0: #{tpu_custom_call.1}
  #allocation0 [shape = 'u32[]', space=smem, size = 0x4, offset = 0x4, fixed_abs, tag = 'smem constant byte address 0x4 - core index']
  #allocation1 [shape = 'u32[144,128]{1,0:T(1,128)}', space=vmem, size = 0x12000, scoped, tag = 'internal scratch']
  %s0 = inlined_call_operand.hbm [shape: f32[64,128], index: 0, kind: input, shape index: {}]
  %s1 = inlined_call_operand.hbm [shape: bf16[128,128], index: 1, kind: input, shape index: {}]
  %s2 = inlined_call_operand.vmem [shape: f32[2,128], index: 2, kind: input, shape index: {}]
  %s3 = inlined_call_operand.hbm [shape: bf16[2,128,128], index: 3, kind: input, shape index: {}]
  %s4 = inlined_call_operand.vmem [shape: f32[2,2,128], index: 4, kind: input, shape index: {}]
  %s5 = inlined_call_operand.hbm [shape: bf16[128,128], index: 5, kind: input, shape index: {}]
  %s6 = inlined_call_operand.vmem [shape: f32[1,128], index: 6, kind: input, shape index: {}]
  %s7 = inlined_call_operand.hbm [shape: f32[64,128], index: 7, kind: output, shape index: {}]
  %s8 = sld [smem:[#allocation0]]
  $region54: #{tpu_custom_call.1} parent=0
    _
  %s10 = ssub.s32 1, %s8
  %s11 = scalar_select 0, %s10, %s8
  $region1: #{tpu_custom_call.1} parent=0
    #allocation2 [shape = 'u8[32768]{0}', space=vmem, size = 0x8000, scoped, tag = 'input window, operand 0, single buffered']
    #allocation3 [shape = 's32[1]{0}', space=sflag, size = 0x4, scoped, tag = 'scoped memory for tpu_custom_call.1']
    #allocation4 [shape = 's32[1]{0}', space=sflag, size = 0x4, scoped, tag = 'scoped memory for tpu_custom_call.1']
    #allocation5 [shape = 'u8[32768]{0}', space=vmem, size = 0x8000, scoped, tag = 'input window, operand 1, single buffered']
    #allocation6 [shape = 's32[1]{0}', space=sflag, size = 0x4, scoped, tag = 'scoped memory for tpu_custom_call.1']
    #allocation7 [shape = 'u8[65536]{0}', space=vmem, size = 0x10000, scoped, tag = 'input window, operand 3, single buffered']
    #allocation8 [shape = 'u8[32768]{0}', space=vmem, size = 0x8000, scoped, tag = 'input window, operand 5, single buffered']
    #allocation9 [shape = 's32[1]{0}', space=sflag, size = 0x4, scoped, tag = 'scoped memory for tpu_custom_call.1']
    #allocation10 [shape = 'u8[32768]{0}', space=vmem, size = 0x8000, scoped, tag = 'output window, operand 0, single buffered']
    %12 = vsyncpa [#allocation3], 0
    %13 = vsyncpa [#allocation6], 0
    %14 = vsyncpa [#allocation9], 0
    %15 = vsyncpa [#allocation4], 0
    // Predicated region
    $region2: #{tpu_custom_call.1} parent=1 // pred_check
      _
    $region3: #{tpu_custom_call.1} parent=1 // pred_check_branch
      %17 = sbr.rel (0) target = $region5
    $region4: #{tpu_custom_call.1} parent=1 // pred_region
      %s19 = ssub.s32 1024, 1024
      %20 = vsyncadd [#allocation3], %s19
      %s21 = sshll.u32 [#allocation2], 4
      %s22 = int_to_ptr.vmem [resolvable:$true] %s21
      %27 = dma.hbm_to_vmem [thread:$0]  %s0, 1024, %s22, [#allocation3], 128, 128, 8
    $region5: #{tpu_custom_call.1} parent=1 // pred_fallthru
      _
    // Predicated region
    $region6: #{tpu_custom_call.1} parent=1 // pred_check
      _
    $region7: #{tpu_custom_call.1} parent=1 // pred_check_branch
      %29 = sbr.rel (0) target = $region9
    $region8: #{tpu_custom_call.1} parent=1 // pred_region
      %s31 = ssub.s32 1024, 1024
      %32 = vsyncadd [#allocation6], %s31
      %s33 = sshll.u32 [#allocation5], 4
      %s34 = int_to_ptr.vmem [resolvable:$true] %s33
      %39 = dma.hbm_to_vmem [thread:$0]  %s1, 1024, %s34, [#allocation6], 64, 64, 4
    $region9: #{tpu_custom_call.1} parent=1 // pred_fallthru
      _
    // Predicated region
    $region10: #{tpu_custom_call.1} parent=1 // pred_check
      _
    $region11: #{tpu_custom_call.1} parent=1 // pred_check_branch
      %41 = sbr.rel (0) target = $region13
    $region12: #{tpu_custom_call.1} parent=1 // pred_region
      _
    $region13: #{tpu_custom_call.1} parent=1 // pred_fallthru
      _
    // Predicated region
    $region14: #{tpu_custom_call.1} parent=1 // pred_check
      _
    $region15: #{tpu_custom_call.1} parent=1 // pred_check_branch
      %43 = sbr.rel (0) target = $region17
    $region16: #{tpu_custom_call.1} parent=1 // pred_region
      %s45 = ssub.s32 2048, 2048
      %46 = vsyncadd [#allocation6], %s45
      %s47 = sshll.u32 [#allocation7], 4
      %s48 = int_to_ptr.vmem [resolvable:$true] %s47
      %53 = dma.hbm_to_vmem [thread:$0]  %s3, 2048, %s48, [#allocation6], 64, 64, 4
    $region17: #{tpu_custom_call.1} parent=1 // pred_fallthru
      _
    // Predicated region
    $region18: #{tpu_custom_call.1} parent=1 // pred_check
      _
    $region19: #{tpu_custom_call.1} parent=1 // pred_check_branch
      %55 = sbr.rel (0) target = $region21
    $region20: #{tpu_custom_call.1} parent=1 // pred_region
      _
    $region21: #{tpu_custom_call.1} parent=1 // pred_fallthru
      _
    // Predicated region
    $region22: #{tpu_custom_call.1} parent=1 // pred_check
      _
    $region23: #{tpu_custom_call.1} parent=1 // pred_check_branch
      %57 = sbr.rel (0) target = $region25
    $region24: #{tpu_custom_call.1} parent=1 // pred_region
      %s59 = ssub.s32 1024, 1024
      %60 = vsyncadd [#allocation9], %s59
      %s61 = sshll.u32 [#allocation8], 4
      %s62 = int_to_ptr.vmem [resolvable:$true] %s61
      %67 = dma.hbm_to_vmem [thread:$0]  %s5, 1024, %s62, [#allocation9], 64, 64, 4
    $region25: #{tpu_custom_call.1} parent=1 // pred_fallthru
      _
    // Predicated region
    $region26: #{tpu_custom_call.1} parent=1 // pred_check
      _
    $region27: #{tpu_custom_call.1} parent=1 // pred_check_branch
      %69 = sbr.rel (0) target = $region29
    $region28: #{tpu_custom_call.1} parent=1 // pred_region
      _
    $region29: #{tpu_custom_call.1} parent=1 // pred_fallthru
      _
    // Predicated region
    $region30: #{tpu_custom_call.1} parent=1 // pred_check
      _
    $region31: #{tpu_custom_call.1} parent=1 // pred_check_branch
      %71 = sbr.rel (0) target = $region33
    $region32: #{tpu_custom_call.1} parent=1 // pred_region
      %72 = dma.done [#allocation3], 1024
    $region33: #{tpu_custom_call.1} parent=1 // pred_fallthru
      _
    // Predicated region
    $region34: #{tpu_custom_call.1} parent=1 // pred_check
      _
    $region35: #{tpu_custom_call.1} parent=1 // pred_check_branch
      %74 = sbr.rel (0) target = $region37
    $region36: #{tpu_custom_call.1} parent=1 // pred_region
      %75 = dma.done [#allocation6], 1024
    $region37: #{tpu_custom_call.1} parent=1 // pred_fallthru
      _
    // Predicated region
    $region38: #{tpu_custom_call.1} parent=1 // pred_check
      _
    $region39: #{tpu_custom_call.1} parent=1 // pred_check_branch
      %77 = sbr.rel (0) target = $region41
    $region40: #{tpu_custom_call.1} parent=1 // pred_region
      %78 = dma.done [#allocation6], 2048
    $region41: #{tpu_custom_call.1} parent=1 // pred_fallthru
      _
    // Predicated region
    $region42: #{tpu_custom_call.1} parent=1 // pred_check
      _
    $region43: #{tpu_custom_call.1} parent=1 // pred_check_branch
      %80 = sbr.rel (0) target = $region45
    $region44: #{tpu_custom_call.1} parent=1 // pred_region
      %81 = dma.done [#allocation9], 1024
    $region45: #{tpu_custom_call.1} parent=1 // pred_fallthru
      _
    %v83 = vld [vmem:[#allocation2] sm:$0xff]
    %v84 = vld [vmem:[#allocation2 + $0x8] sm:$0xff]
    %v85 = vld [vmem:[#allocation2 + $0x10] sm:$0xff]
    %v86 = vld [vmem:[#allocation2 + $0x18] sm:$0xff]
    %v87 = vld [vmem:[#allocation2 + $0x20] sm:$0xff]
    %v88 = vld [vmem:[#allocation2 + $0x28] sm:$0xff]
    %v89 = vld [vmem:[#allocation2 + $0x30] sm:$0xff]
    %v90 = vld [vmem:[#allocation2 + $0x38] sm:$0xff]
    %v91 = vld [vmem:[#allocation5] sm:$0xf]
    %v92 = vld [vmem:[#allocation5 + $0x4] sm:$0xf]
    %v93 = vld [vmem:[#allocation5 + $0x8] sm:$0xf]
    %v94 = vld [vmem:[#allocation5 + $0xc] sm:$0xf]
    %v95 = vld [vmem:[#allocation5 + $0x10] sm:$0xf]
    %v96 = vld [vmem:[#allocation5 + $0x14] sm:$0xf]
    %v97 = vld [vmem:[#allocation5 + $0x18] sm:$0xf]
    %v98 = vld [vmem:[#allocation5 + $0x1c] sm:$0xf]
    %v99 = vld [vmem:[#allocation5 + $0x20] sm:$0xf]
    %v100 = vld [vmem:[#allocation5 + $0x24] sm:$0xf]
    %v101 = vld [vmem:[#allocation5 + $0x28] sm:$0xf]
    %v102 = vld [vmem:[#allocation5 + $0x2c] sm:$0xf]
    %v103 = vld [vmem:[#allocation5 + $0x30] sm:$0xf]
    %v104 = vld [vmem:[#allocation5 + $0x34] sm:$0xf]
    %v105 = vld [vmem:[#allocation5 + $0x38] sm:$0xf]
    %v106 = vld [vmem:[#allocation5 + $0x3c] sm:$0xf]
    %v107 = vld [vmem:[%s2] sm:$0x3]
    %v108 = vpack.c.bf16 %v84, %v83
    %v109 = vpack.c.bf16 %v86, %v85
    %v110 = vpack.c.bf16 %v88, %v87
    %v111 = vpack.c.bf16 %v90, %v89
    %v128 = vunpack.c.l.b16 %v91
    %v129 = vunpack.c.l.b16 %v92
    %v130 = vunpack.c.l.b16 %v93
    %v131 = vunpack.c.l.b16 %v94
    %v132 = vunpack.c.l.b16 %v95
    %v133 = vunpack.c.l.b16 %v96
    %v134 = vunpack.c.l.b16 %v97
    %v135 = vunpack.c.l.b16 %v98
    %v136 = vunpack.c.l.b16 %v99
    %v137 = vunpack.c.l.b16 %v100
    %v138 = vunpack.c.l.b16 %v101
    %v139 = vunpack.c.l.b16 %v102
    %v140 = vunpack.c.l.b16 %v103
    %v141 = vunpack.c.l.b16 %v104
    %v142 = vunpack.c.l.b16 %v105
    %v143 = vunpack.c.l.b16 %v106
    %v144 = vpack.c.b16 %v129, %v128
    %v145 = vpack.c.b16 %v131, %v130
    %v146 = vpack.c.b16 %v133, %v132
    %v147 = vpack.c.b16 %v135, %v134
    %v148 = vpack.c.b16 %v137, %v136
    %v149 = vpack.c.b16 %v139, %v138
    %v150 = vpack.c.b16 %v141, %v140
    %v151 = vpack.c.b16 %v143, %v142
    %160 = vmatprep.subr.bf16.mxu0 0
    %161 = vmatpush1.bf16.msra.mxu0 %v144
    %162 = vmatprep.subr.bf16.mxu0 0
    %163 = vmatpush1.bf16.msra.mxu0 %v145
    %164 = vmatprep.subr.bf16.mxu0 0
    %165 = vmatpush1.bf16.msra.mxu0 %v146
    %166 = vmatprep.subr.bf16.mxu0 0
    %167 = vmatpush1.bf16.msra.mxu0 %v147
    %168 = vmatprep.subr.bf16.mxu0 0
    %169 = vmatpush1.bf16.msra.mxu0 %v148
    %170 = vmatprep.subr.bf16.mxu0 0
    %171 = vmatpush1.bf16.msra.mxu0 %v149
    %172 = vmatprep.subr.bf16.mxu0 0
    %173 = vmatpush1.bf16.msra.mxu0 %v150
    %174 = vmatprep.subr.bf16.mxu0 0
    %175 = vmatpush1.bf16.msra.mxu0 %v151
    %176 = vmatprep.subr.bf16.mxu0 0
    %177 = vmatpush1.bf16.msra.mxu0 0
    %178 = vmatprep.subr.bf16.mxu0 0
    %179 = vmatpush1.bf16.msra.mxu0 0
    %180 = vmatprep.subr.bf16.mxu0 0
    %181 = vmatpush1.bf16.msra.mxu0 0
    %182 = vmatprep.subr.bf16.mxu0 0
    %183 = vmatpush1.bf16.msra.mxu0 0
    %184 = vmatprep.subr.bf16.mxu0 0
    %185 = vmatpush1.bf16.msra.mxu0 0
    %186 = vmatprep.subr.bf16.mxu0 0
    %187 = vmatpush1.bf16.msra.mxu0 0
    %188 = vmatprep.subr.bf16.mxu0 0
    %189 = vmatpush1.bf16.msra.mxu0 0
    %190 = vmatprep.subr.bf16.mxu0 0
    %191 = vmatpush1.bf16.msra.mxu0 0
    %192 = vmatprep.mubr.bf16.mxu0 0
    %193 = vmatmul.mubr.bf16.gmra.mrb[0].mxu0 %v108
    %v194 = vpop.f32.mrb[0].mxu0
    %v195 = vadd.f32 0.0, %v194
    %v196 = vpop.f32.mrb[0].mxu0
    %v197 = vpop.f32.mrb[0].mxu0
    %v198 = vadd.f32 0.0, %v197
    %v199 = vpop.f32.mrb[0].mxu0
    %200 = vmatprep.mubr.bf16.mxu0 0
    %201 = vmatmul.mubr.bf16.gmra.mrb[0].mxu0 %v109
    %v202 = vpop.f32.mrb[0].mxu0
    %v203 = vadd.f32 0.0, %v202
    %v204 = vpop.f32.mrb[0].mxu0
    %v205 = vpop.f32.mrb[0].mxu0
    %v206 = vadd.f32 0.0, %v205
    %v207 = vpop.f32.mrb[0].mxu0
    %208 = vmatprep.mubr.bf16.mxu0 0
    %209 = vmatmul.mubr.bf16.gmra.mrb[0].mxu0 %v110
    %v210 = vpop.f32.mrb[0].mxu0
    %v211 = vadd.f32 0.0, %v210
    %v212 = vpop.f32.mrb[0].mxu0
    %v213 = vpop.f32.mrb[0].mxu0
    %v214 = vadd.f32 0.0, %v213
    %v215 = vpop.f32.mrb[0].mxu0
    %216 = vmatprep.mubr.bf16.mxu0 0
    %217 = vmatmul.mubr.bf16.gmra.mrb[0].mxu0 %v111
    %v218 = vpop.f32.mrb[0].mxu0
    %v219 = vadd.f32 0.0, %v218
    %v220 = vpop.f32.mrb[0].mxu0
    %v221 = vpop.f32.mrb[0].mxu0
    %v222 = vadd.f32 0.0, %v221
    %v223 = vpop.f32.mrb[0].mxu0
    %224 = vdwg.mxu0
    %v225 = vadd.f32 %v195, %v198
    %v226 = vadd.f32 %v225, %v203
    %v227 = vadd.f32 %v226, %v206
    %v228 = vadd.f32 %v227, %v211
    %v229 = vadd.f32 %v228, %v214
    %v230 = vadd.f32 %v229, %v219
    %v231 = vadd.f32 %v230, %v222
    %v232 = vrot.slane %v231, 4
    %v233 = vadd.f32 %v231, %v232
    %v234 = vrot.slane %v233, 2
    %v235 = vadd.f32 %v233, %v234
    %v236 = vrot.slane %v235, 1
    %v237 = vadd.f32 %v235, %v236
    %v238 = vrcp.pop 64.0
    %v239 = vmul.f32 %v237, %v238
    %v240 = vmul.f32 %v195, %v195
    %v241 = vmul.f32 %v198, %v198
    %v242 = vmul.f32 %v203, %v203
    %v243 = vmul.f32 %v206, %v206
    %v244 = vmul.f32 %v211, %v211
    %v245 = vmul.f32 %v214, %v214
    %v246 = vmul.f32 %v219, %v219
    %v247 = vmul.f32 %v222, %v222
    %v248 = vadd.f32 %v240, %v241
    %v249 = vadd.f32 %v248, %v242
    %v250 = vadd.f32 %v249, %v243
    %v251 = vadd.f32 %v250, %v244
    %v252 = vadd.f32 %v251, %v245
    %v253 = vadd.f32 %v252, %v246
    %v254 = vadd.f32 %v253, %v247
    %v255 = vrot.slane %v254, 4
    %v256 = vadd.f32 %v254, %v255
    %v257 = vrot.slane %v256, 2
    %v258 = vadd.f32 %v256, %v257
    %v259 = vrot.slane %v258, 1
    %v260 = vadd.f32 %v258, %v259
    %v261 = vmul.f32 %v260, %v238
    %v262 = vmul.f32 %v239, %v239
    %v263 = vsub.f32 %v261, %v262
    %v264 = vadd.f32 %v263, 1e-05
    %v265 = vrsqrt.pop %v264
    %v266 = vmul.f32 %v107, %v265
    %v267 = vmul.f32 %v239, %v266
    %v269 = vrot.slane %v267, 7
    %v271 = vsub.f32 %v107, %v269
    %v272 = vlaneseq
    %v273 = vshrl.u32 %v272, 7
    %v274 = vsub.s32 0, %v273
    %v275 = vrot.slane %v266, %v274
    %v276 = vmul.f32 %v195, %v275
    %v277 = vmul.f32 %v198, %v275
    %v278 = vmul.f32 %v203, %v275
    %v279 = vmul.f32 %v206, %v275
    %v280 = vmul.f32 %v211, %v275
    %v281 = vmul.f32 %v214, %v275
    %v282 = vmul.f32 %v219, %v275
    %v283 = vmul.f32 %v222, %v275
    %v284 = vlaneseq
    %v285 = vshrl.u32 %v284, 7
    %v286 = vsub.s32 1, %v285
    %v287 = vrot.slane %v271, %v286
    %v288 = vadd.f32 %v276, %v287
    %v289 = vadd.f32 %v277, %v287
    %v290 = vadd.f32 %v278, %v287
    %v291 = vadd.f32 %v279, %v287
    %v292 = vadd.f32 %v280, %v287
    %v293 = vadd.f32 %v281, %v287
    %v294 = vadd.f32 %v282, %v287
    %v295 = vadd.f32 %v283, %v287
    %v296 = vmax.f32 %v288, 0.0
    %v297 = vmax.f32 %v289, 0.0
    %v298 = vmax.f32 %v290, 0.0
    %v299 = vmax.f32 %v291, 0.0
    %v300 = vmax.f32 %v292, 0.0
    %v301 = vmax.f32 %v293, 0.0
    %v302 = vmax.f32 %v294, 0.0
    %v303 = vmax.f32 %v295, 0.0
    %v304 = vld [vmem:[#allocation7] sm:$0xf]
    %v305 = vld [vmem:[#allocation7 + $0x4] sm:$0xf]
    %v306 = vld [vmem:[#allocation7 + $0x8] sm:$0xf]
    %v307 = vld [vmem:[#allocation7 + $0xc] sm:$0xf]
    %v308 = vld [vmem:[#allocation7 + $0x10] sm:$0xf]
    %v309 = vld [vmem:[#allocation7 + $0x14] sm:$0xf]
    %v310 = vld [vmem:[#allocation7 + $0x18] sm:$0xf]
    %v311 = vld [vmem:[#allocation7 + $0x1c] sm:$0xf]
    %v312 = vld [vmem:[#allocation7 + $0x20] sm:$0xf]
    %v313 = vld [vmem:[#allocation7 + $0x24] sm:$0xf]
    %v314 = vld [vmem:[#allocation7 + $0x28] sm:$0xf]
    %v315 = vld [vmem:[#allocation7 + $0x2c] sm:$0xf]
    %v316 = vld [vmem:[#allocation7 + $0x30] sm:$0xf]
    %v317 = vld [vmem:[#allocation7 + $0x34] sm:$0xf]
    %v318 = vld [vmem:[#allocation7 + $0x38] sm:$0xf]
    %v319 = vld [vmem:[#allocation7 + $0x3c] sm:$0xf]
    %v320 = vld [vmem:[%s4] sm:$0x3]
    %v321 = vpack.c.bf16 %v297, %v296
    %v322 = vpack.c.bf16 %v299, %v298
    %v323 = vpack.c.bf16 %v301, %v300
    %v324 = vpack.c.bf16 %v303, %v302
    %v341 = vunpack.c.l.b16 %v304
    %v342 = vunpack.c.l.b16 %v305
    %v343 = vunpack.c.l.b16 %v306
    %v344 = vunpack.c.l.b16 %v307
    %v345 = vunpack.c.l.b16 %v308
    %v346 = vunpack.c.l.b16 %v309
    %v347 = vunpack.c.l.b16 %v310
    %v348 = vunpack.c.l.b16 %v311
    %v349 = vunpack.c.l.b16 %v312
    %v350 = vunpack.c.l.b16 %v313
    %v351 = vunpack.c.l.b16 %v314
    %v352 = vunpack.c.l.b16 %v315
    %v353 = vunpack.c.l.b16 %v316
    %v354 = vunpack.c.l.b16 %v317
    %v355 = vunpack.c.l.b16 %v318
    %v356 = vunpack.c.l.b16 %v319
    %v357 = vpack.c.b16 %v342, %v341
    %v358 = vpack.c.b16 %v344, %v343
    %v359 = vpack.c.b16 %v346, %v345
    %v360 = vpack.c.b16 %v348, %v347
    %v361 = vpack.c.b16 %v350, %v349
    %v362 = vpack.c.b16 %v352, %v351
    %v363 = vpack.c.b16 %v354, %v353
    %v364 = vpack.c.b16 %v356, %v355
    %373 = vmatprep.subr.bf16.mxu0 0
    %374 = vmatpush1.bf16.msra.mxu0 %v357
    %375 = vmatprep.subr.bf16.mxu0 0
    %376 = vmatpush1.bf16.msra.mxu0 %v358
    %377 = vmatprep.subr.bf16.mxu0 0
    %378 = vmatpush1.bf16.msra.mxu0 %v359
    %379 = vmatprep.subr.bf16.mxu0 0
    %380 = vmatpush1.bf16.msra.mxu0 %v360
    %381 = vmatprep.subr.bf16.mxu0 0
    %382 = vmatpush1.bf16.msra.mxu0 %v361
    %383 = vmatprep.subr.bf16.mxu0 0
    %384 = vmatpush1.bf16.msra.mxu0 %v362
    %385 = vmatprep.subr.bf16.mxu0 0
    %386 = vmatpush1.bf16.msra.mxu0 %v363
    %387 = vmatprep.subr.bf16.mxu0 0
    %388 = vmatpush1.bf16.msra.mxu0 %v364
    %389 = vmatprep.subr.bf16.mxu0 0
    %390 = vmatpush1.bf16.msra.mxu0 0
    %391 = vmatprep.subr.bf16.mxu0 0
    %392 = vmatpush1.bf16.msra.mxu0 0
    %393 = vmatprep.subr.bf16.mxu0 0
    %394 = vmatpush1.bf16.msra.mxu0 0
    %395 = vmatprep.subr.bf16.mxu0 0
    %396 = vmatpush1.bf16.msra.mxu0 0
    %397 = vmatprep.subr.bf16.mxu0 0
    %398 = vmatpush1.bf16.msra.mxu0 0
    %399 = vmatprep.subr.bf16.mxu0 0
    %400 = vmatpush1.bf16.msra.mxu0 0
    %401 = vmatprep.subr.bf16.mxu0 0
    %402 = vmatpush1.bf16.msra.mxu0 0
    %403 = vmatprep.subr.bf16.mxu0 0
    %404 = vmatpush1.bf16.msra.mxu0 0
    %405 = vmatprep.mubr.bf16.mxu0 0
    %406 = vmatmul.mubr.bf16.gmra.mrb[0].mxu0 %v321
    %v407 = vpop.f32.mrb[0].mxu0
    %v408 = vadd.f32 0.0, %v407
    %v409 = vpop.f32.mrb[0].mxu0
    %v410 = vpop.f32.mrb[0].mxu0
    %v411 = vadd.f32 0.0, %v410
    %v412 = vpop.f32.mrb[0].mxu0
    %413 = vmatprep.mubr.bf16.mxu0 0
    %414 = vmatmul.mubr.bf16.gmra.mrb[0].mxu0 %v322
    %v415 = vpop.f32.mrb[0].mxu0
    %v416 = vadd.f32 0.0, %v415
    %v417 = vpop.f32.mrb[0].mxu0
    %v418 = vpop.f32.mrb[0].mxu0
    %v419 = vadd.f32 0.0, %v418
    %v420 = vpop.f32.mrb[0].mxu0
    %421 = vmatprep.mubr.bf16.mxu0 0
    %422 = vmatmul.mubr.bf16.gmra.mrb[0].mxu0 %v323
    %v423 = vpop.f32.mrb[0].mxu0
    %v424 = vadd.f32 0.0, %v423
    %v425 = vpop.f32.mrb[0].mxu0
    %v426 = vpop.f32.mrb[0].mxu0
    %v427 = vadd.f32 0.0, %v426
    %v428 = vpop.f32.mrb[0].mxu0
    %429 = vmatprep.mubr.bf16.mxu0 0
    %430 = vmatmul.mubr.bf16.gmra.mrb[0].mxu0 %v324
    %v431 = vpop.f32.mrb[0].mxu0
    %v432 = vadd.f32 0.0, %v431
    %v433 = vpop.f32.mrb[0].mxu0
    %v434 = vpop.f32.mrb[0].mxu0
    %v435 = vadd.f32 0.0, %v434
    %v436 = vpop.f32.mrb[0].mxu0
    %437 = vdwg.mxu0
    %v438 = vadd.f32 %v408, %v411
    %v439 = vadd.f32 %v438, %v416
    %v440 = vadd.f32 %v439, %v419
    %v441 = vadd.f32 %v440, %v424
    %v442 = vadd.f32 %v441, %v427
    %v443 = vadd.f32 %v442, %v432
    %v444 = vadd.f32 %v443, %v435
    %v445 = vrot.slane %v444, 4
    %v446 = vadd.f32 %v444, %v445
    %v447 = vrot.slane %v446, 2
    %v448 = vadd.f32 %v446, %v447
    %v449 = vrot.slane %v448, 1
    %v450 = vadd.f32 %v448, %v449
    %v451 = vmul.f32 %v450, %v238
    %v452 = vmul.f32 %v408, %v408
    %v453 = vmul.f32 %v411, %v411
    %v454 = vmul.f32 %v416, %v416
    %v455 = vmul.f32 %v419, %v419
    %v456 = vmul.f32 %v424, %v424
    %v457 = vmul.f32 %v427, %v427
    %v458 = vmul.f32 %v432, %v432
    %v459 = vmul.f32 %v435, %v435
    %v460 = vadd.f32 %v452, %v453
    %v461 = vadd.f32 %v460, %v454
    %v462 = vadd.f32 %v461, %v455
    %v463 = vadd.f32 %v462, %v456
    %v464 = vadd.f32 %v463, %v457
    %v465 = vadd.f32 %v464, %v458
    %v466 = vadd.f32 %v465, %v459
    %v467 = vrot.slane %v466, 4
    %v468 = vadd.f32 %v466, %v467
    %v469 = vrot.slane %v468, 2
    %v470 = vadd.f32 %v468, %v469
    %v471 = vrot.slane %v470, 1
    %v472 = vadd.f32 %v470, %v471
    %v473 = vmul.f32 %v472, %v238
    %v474 = vmul.f32 %v451, %v451
    %v475 = vsub.f32 %v473, %v474
    %v476 = vadd.f32 %v475, 1e-05
    %v477 = vrsqrt.pop %v476
    %v478 = vmul.f32 %v320, %v477
    %v479 = vmul.f32 %v451, %v478
    %v481 = vrot.slane %v479, 7
    %v483 = vsub.f32 %v320, %v481
    %v484 = vlaneseq
    %v485 = vshrl.u32 %v484, 7
    %v486 = vsub.s32 0, %v485
    %v487 = vrot.slane %v478, %v486
    %v488 = vmul.f32 %v408, %v487
    %v489 = vmul.f32 %v411, %v487
    %v490 = vmul.f32 %v416, %v487
    %v491 = vmul.f32 %v419, %v487
    %v492 = vmul.f32 %v424, %v487
    %v493 = vmul.f32 %v427, %v487
    %v494 = vmul.f32 %v432, %v487
    %v495 = vmul.f32 %v435, %v487
    %v496 = vlaneseq
    %v497 = vshrl.u32 %v496, 7
    %v498 = vsub.s32 1, %v497
    %v499 = vrot.slane %v483, %v498
    %v500 = vadd.f32 %v488, %v499
    %v501 = vadd.f32 %v489, %v499
    %v502 = vadd.f32 %v490, %v499
    %v503 = vadd.f32 %v491, %v499
    %v504 = vadd.f32 %v492, %v499
    %v505 = vadd.f32 %v493, %v499
    %v506 = vadd.f32 %v494, %v499
    %v507 = vadd.f32 %v495, %v499
    %v508 = vmax.f32 %v500, 0.0
    %v509 = vmax.f32 %v501, 0.0
    %v510 = vmax.f32 %v502, 0.0
    %v511 = vmax.f32 %v503, 0.0
    %v512 = vmax.f32 %v504, 0.0
    %v513 = vmax.f32 %v505, 0.0
    %v514 = vmax.f32 %v506, 0.0
    %v515 = vmax.f32 %v507, 0.0
    %s516 = scalar_lea.vmem [#allocation7], 64
    %v517 = vld [vmem:[%s516] sm:$0xf]
    %v518 = vld [vmem:[%s516 + $0x4] sm:$0xf]
    %v519 = vld [vmem:[%s516 + $0x8] sm:$0xf]
    %v520 = vld [vmem:[%s516 + $0xc] sm:$0xf]
    %v521 = vld [vmem:[%s516 + $0x10] sm:$0xf]
    %v522 = vld [vmem:[%s516 + $0x14] sm:$0xf]
    %v523 = vld [vmem:[%s516 + $0x18] sm:$0xf]
    %v524 = vld [vmem:[%s516 + $0x1c] sm:$0xf]
    %v525 = vld [vmem:[%s516 + $0x20] sm:$0xf]
    %v526 = vld [vmem:[%s516 + $0x24] sm:$0xf]
    %v527 = vld [vmem:[%s516 + $0x28] sm:$0xf]
    %v528 = vld [vmem:[%s516 + $0x2c] sm:$0xf]
    %v529 = vld [vmem:[%s516 + $0x30] sm:$0xf]
    %v530 = vld [vmem:[%s516 + $0x34] sm:$0xf]
    %v531 = vld [vmem:[%s516 + $0x38] sm:$0xf]
    %v532 = vld [vmem:[%s516 + $0x3c] sm:$0xf]
    %s533 = scalar_lea.vmem %s4, 2
    %v534 = vld [vmem:[%s533] sm:$0x3]
    %v535 = vpack.c.bf16 %v509, %v508
    %v536 = vpack.c.bf16 %v511, %v510
    %v537 = vpack.c.bf16 %v513, %v512
    %v538 = vpack.c.bf16 %v515, %v514
    %v555 = vunpack.c.l.b16 %v517
    %v556 = vunpack.c.l.b16 %v518
    %v557 = vunpack.c.l.b16 %v519
    %v558 = vunpack.c.l.b16 %v520
    %v559 = vunpack.c.l.b16 %v521
    %v560 = vunpack.c.l.b16 %v522
    %v561 = vunpack.c.l.b16 %v523
    %v562 = vunpack.c.l.b16 %v524
    %v563 = vunpack.c.l.b16 %v525
    %v564 = vunpack.c.l.b16 %v526
    %v565 = vunpack.c.l.b16 %v527
    %v566 = vunpack.c.l.b16 %v528
    %v567 = vunpack.c.l.b16 %v529
    %v568 = vunpack.c.l.b16 %v530
    %v569 = vunpack.c.l.b16 %v531
    %v570 = vunpack.c.l.b16 %v532
    %v571 = vpack.c.b16 %v556, %v555
    %v572 = vpack.c.b16 %v558, %v557
    %v573 = vpack.c.b16 %v560, %v559
    %v574 = vpack.c.b16 %v562, %v561
    %v575 = vpack.c.b16 %v564, %v563
    %v576 = vpack.c.b16 %v566, %v565
    %v577 = vpack.c.b16 %v568, %v567
    %v578 = vpack.c.b16 %v570, %v569
    %587 = vmatprep.subr.bf16.mxu0 0
    %588 = vmatpush1.bf16.msra.mxu0 %v571
    %589 = vmatprep.subr.bf16.mxu0 0
    %590 = vmatpush1.bf16.msra.mxu0 %v572
    %591 = vmatprep.subr.bf16.mxu0 0
    %592 = vmatpush1.bf16.msra.mxu0 %v573
    %593 = vmatprep.subr.bf16.mxu0 0
    %594 = vmatpush1.bf16.msra.mxu0 %v574
    %595 = vmatprep.subr.bf16.mxu0 0
    %596 = vmatpush1.bf16.msra.mxu0 %v575
    %597 = vmatprep.subr.bf16.mxu0 0
    %598 = vmatpush1.bf16.msra.mxu0 %v576
    %599 = vmatprep.subr.bf16.mxu0 0
    %600 = vmatpush1.bf16.msra.mxu0 %v577
    %601 = vmatprep.subr.bf16.mxu0 0
    %602 = vmatpush1.bf16.msra.mxu0 %v578
    %603 = vmatprep.subr.bf16.mxu0 0
    %604 = vmatpush1.bf16.msra.mxu0 0
    %605 = vmatprep.subr.bf16.mxu0 0
    %606 = vmatpush1.bf16.msra.mxu0 0
    %607 = vmatprep.subr.bf16.mxu0 0
    %608 = vmatpush1.bf16.msra.mxu0 0
    %609 = vmatprep.subr.bf16.mxu0 0
    %610 = vmatpush1.bf16.msra.mxu0 0
    %611 = vmatprep.subr.bf16.mxu0 0
    %612 = vmatpush1.bf16.msra.mxu0 0
    %613 = vmatprep.subr.bf16.mxu0 0
    %614 = vmatpush1.bf16.msra.mxu0 0
    %615 = vmatprep.subr.bf16.mxu0 0
    %616 = vmatpush1.bf16.msra.mxu0 0
    %617 = vmatprep.subr.bf16.mxu0 0
    %618 = vmatpush1.bf16.msra.mxu0 0
    %619 = vmatprep.mubr.bf16.mxu0 0
    %620 = vmatmul.mubr.bf16.gmra.mrb[0].mxu0 %v535
    %v621 = vpop.f32.mrb[0].mxu0
    %v622 = vadd.f32 0.0, %v621
    %v623 = vpop.f32.mrb[0].mxu0
    %v624 = vpop.f32.mrb[0].mxu0
    %v625 = vadd.f32 0.0, %v624
    %v626 = vpop.f32.mrb[0].mxu0
    %627 = vmatprep.mubr.bf16.mxu0 0
    %628 = vmatmul.mubr.bf16.gmra.mrb[0].mxu0 %v536
    %v629 = vpop.f32.mrb[0].mxu0
    %v630 = vadd.f32 0.0, %v629
    %v631 = vpop.f32.mrb[0].mxu0
    %v632 = vpop.f32.mrb[0].mxu0
    %v633 = vadd.f32 0.0, %v632
    %v634 = vpop.f32.mrb[0].mxu0
    %635 = vmatprep.mubr.bf16.mxu0 0
    %636 = vmatmul.mubr.bf16.gmra.mrb[0].mxu0 %v537
    %v637 = vpop.f32.mrb[0].mxu0
    %v638 = vadd.f32 0.0, %v637
    %v639 = vpop.f32.mrb[0].mxu0
    %v640 = vpop.f32.mrb[0].mxu0
    %v641 = vadd.f32 0.0, %v640
    %v642 = vpop.f32.mrb[0].mxu0
    %643 = vmatprep.mubr.bf16.mxu0 0
    %644 = vmatmul.mubr.bf16.gmra.mrb[0].mxu0 %v538
    %v645 = vpop.f32.mrb[0].mxu0
    %v646 = vadd.f32 0.0, %v645
    %v647 = vpop.f32.mrb[0].mxu0
    %v648 = vpop.f32.mrb[0].mxu0
    %v649 = vadd.f32 0.0, %v648
    %v650 = vpop.f32.mrb[0].mxu0
    %651 = vdwg.mxu0
    %v652 = vadd.f32 %v622, %v625
    %v653 = vadd.f32 %v652, %v630
    %v654 = vadd.f32 %v653, %v633
    %v655 = vadd.f32 %v654, %v638
    %v656 = vadd.f32 %v655, %v641
    %v657 = vadd.f32 %v656, %v646
    %v658 = vadd.f32 %v657, %v649
    %v659 = vrot.slane %v658, 4
    %v660 = vadd.f32 %v658, %v659
    %v661 = vrot.slane %v660, 2
    %v662 = vadd.f32 %v660, %v661
    %v663 = vrot.slane %v662, 1
    %v664 = vadd.f32 %v662, %v663
    %v665 = vmul.f32 %v664, %v238
    %v666 = vmul.f32 %v622, %v622
    %v667 = vmul.f32 %v625, %v625
    %v668 = vmul.f32 %v630, %v630
    %v669 = vmul.f32 %v633, %v633
    %v670 = vmul.f32 %v638, %v638
    %v671 = vmul.f32 %v641, %v641
    %v672 = vmul.f32 %v646, %v646
    %v673 = vmul.f32 %v649, %v649
    %v674 = vadd.f32 %v666, %v667
    %v675 = vadd.f32 %v674, %v668
    %v676 = vadd.f32 %v675, %v669
    %v677 = vadd.f32 %v676, %v670
    %v678 = vadd.f32 %v677, %v671
    %v679 = vadd.f32 %v678, %v672
    %v680 = vadd.f32 %v679, %v673
    %v681 = vrot.slane %v680, 4
    %v682 = vadd.f32 %v680, %v681
    %v683 = vrot.slane %v682, 2
    %v684 = vadd.f32 %v682, %v683
    %v685 = vrot.slane %v684, 1
    %v686 = vadd.f32 %v684, %v685
    %v687 = vmul.f32 %v686, %v238
    %v688 = vmul.f32 %v665, %v665
    %v689 = vsub.f32 %v687, %v688
    %v690 = vadd.f32 %v689, 1e-05
    %v691 = vrsqrt.pop %v690
    %v692 = vmul.f32 %v534, %v691
    %v693 = vmul.f32 %v665, %v692
    %v695 = vrot.slane %v693, 7
    %v697 = vsub.f32 %v534, %v695
    %v698 = vlaneseq
    %v699 = vshrl.u32 %v698, 7
    %v700 = vsub.s32 0, %v699
    %v701 = vrot.slane %v692, %v700
    %v702 = vmul.f32 %v622, %v701
    %v703 = vmul.f32 %v625, %v701
    %v704 = vmul.f32 %v630, %v701
    %v705 = vmul.f32 %v633, %v701
    %v706 = vmul.f32 %v638, %v701
    %v707 = vmul.f32 %v641, %v701
    %v708 = vmul.f32 %v646, %v701
    %v709 = vmul.f32 %v649, %v701
    %v710 = vlaneseq
    %v711 = vshrl.u32 %v710, 7
    %v712 = vsub.s32 1, %v711
    %v713 = vrot.slane %v697, %v712
    %v714 = vadd.f32 %v702, %v713
    %v715 = vadd.f32 %v703, %v713
    %v716 = vadd.f32 %v704, %v713
    %v717 = vadd.f32 %v705, %v713
    %v718 = vadd.f32 %v706, %v713
    %v719 = vadd.f32 %v707, %v713
    %v720 = vadd.f32 %v708, %v713
    %v721 = vadd.f32 %v709, %v713
    %v722 = vmax.f32 %v714, 0.0
    %v723 = vmax.f32 %v715, 0.0
    %v724 = vmax.f32 %v716, 0.0
    %v725 = vmax.f32 %v717, 0.0
    %v726 = vmax.f32 %v718, 0.0
    %v727 = vmax.f32 %v719, 0.0
    %v728 = vmax.f32 %v720, 0.0
    %v729 = vmax.f32 %v721, 0.0
    %v730 = vpack.c.bf16 %v723, %v722
    %v731 = vpack.c.bf16 %v725, %v724
    %v732 = vpack.c.bf16 %v727, %v726
    %v733 = vpack.c.bf16 %v729, %v728
    %v734 = vld [vmem:[#allocation8] sm:$0xf]
    %v735 = vld [vmem:[#allocation8 + $0x4] sm:$0xf]
    %v736 = vld [vmem:[#allocation8 + $0x8] sm:$0xf]
    %v737 = vld [vmem:[#allocation8 + $0xc] sm:$0xf]
    %v738 = vld [vmem:[#allocation8 + $0x10] sm:$0xf]
    %v739 = vld [vmem:[#allocation8 + $0x14] sm:$0xf]
    %v740 = vld [vmem:[#allocation8 + $0x18] sm:$0xf]
    %v741 = vld [vmem:[#allocation8 + $0x1c] sm:$0xf]
    %v742 = vld [vmem:[#allocation8 + $0x20] sm:$0xf]
    %v743 = vld [vmem:[#allocation8 + $0x24] sm:$0xf]
    %v744 = vld [vmem:[#allocation8 + $0x28] sm:$0xf]
    %v745 = vld [vmem:[#allocation8 + $0x2c] sm:$0xf]
    %v746 = vld [vmem:[#allocation8 + $0x30] sm:$0xf]
    %v747 = vld [vmem:[#allocation8 + $0x34] sm:$0xf]
    %v748 = vld [vmem:[#allocation8 + $0x38] sm:$0xf]
    %v749 = vld [vmem:[#allocation8 + $0x3c] sm:$0xf]
    %v750 = vld [vmem:[%s6] sm:$0x1]
    %v752 = vlaneseq
    %v753 = vshrl.u32 %v752, 7
    %v754 = vsub.s32 0, %v753
    %v755 = vrot.slane %v750, %v754
    %v773 = vunpack.c.l.b16 %v734
    %v774 = vunpack.c.l.b16 %v735
    %v775 = vunpack.c.l.b16 %v736
    %v776 = vunpack.c.l.b16 %v737
    %v777 = vunpack.c.l.b16 %v738
    %v778 = vunpack.c.l.b16 %v739
    %v779 = vunpack.c.l.b16 %v740
    %v780 = vunpack.c.l.b16 %v741
    %v781 = vunpack.c.l.b16 %v742
    %v782 = vunpack.c.l.b16 %v743
    %v783 = vunpack.c.l.b16 %v744
    %v784 = vunpack.c.l.b16 %v745
    %v785 = vunpack.c.l.b16 %v746
    %v786 = vunpack.c.l.b16 %v747
    %v787 = vunpack.c.l.b16 %v748
    %v788 = vunpack.c.l.b16 %v749
    %v789 = vpack.c.b16 %v774, %v773
    %v790 = vpack.c.b16 %v776, %v775
    %v791 = vpack.c.b16 %v778, %v777
    %v792 = vpack.c.b16 %v780, %v779
    %v793 = vpack.c.b16 %v782, %v781
    %v794 = vpack.c.b16 %v784, %v783
    %v795 = vpack.c.b16 %v786, %v785
    %v796 = vpack.c.b16 %v788, %v787
    %805 = vmatprep.subr.bf16.mxu0 0
    %806 = vmatpush1.bf16.msra.mxu0 %v789
    %807 = vmatprep.subr.bf16.mxu0 0
    %808 = vmatpush1.bf16.msra.mxu0 %v790
    %809 = vmatprep.subr.bf16.mxu0 0
    %810 = vmatpush1.bf16.msra.mxu0 %v791
    %811 = vmatprep.subr.bf16.mxu0 0
    %812 = vmatpush1.bf16.msra.mxu0 %v792
    %813 = vmatprep.subr.bf16.mxu0 0
    %814 = vmatpush1.bf16.msra.mxu0 %v793
    %815 = vmatprep.subr.bf16.mxu0 0
    %816 = vmatpush1.bf16.msra.mxu0 %v794
    %817 = vmatprep.subr.bf16.mxu0 0
    %818 = vmatpush1.bf16.msra.mxu0 %v795
    %819 = vmatprep.subr.bf16.mxu0 0
    %820 = vmatpush1.bf16.msra.mxu0 %v796
    %821 = vmatprep.subr.bf16.mxu0 0
    %822 = vmatpush1.bf16.msra.mxu0 0
    %823 = vmatprep.subr.bf16.mxu0 0
    %824 = vmatpush1.bf16.msra.mxu0 0
    %825 = vmatprep.subr.bf16.mxu0 0
    %826 = vmatpush1.bf16.msra.mxu0 0
    %827 = vmatprep.subr.bf16.mxu0 0
    %828 = vmatpush1.bf16.msra.mxu0 0
    %829 = vmatprep.subr.bf16.mxu0 0
    %830 = vmatpush1.bf16.msra.mxu0 0
    %831 = vmatprep.subr.bf16.mxu0 0
    %832 = vmatpush1.bf16.msra.mxu0 0
    %833 = vmatprep.subr.bf16.mxu0 0
    %834 = vmatpush1.bf16.msra.mxu0 0
    %835 = vmatprep.subr.bf16.mxu0 0
    %836 = vmatpush1.bf16.msra.mxu0 0
    %837 = vmatprep.mubr.bf16.mxu0 0
    %838 = vmatmul.mubr.bf16.gmra.mrb[0].mxu0 %v730
    %v839 = vpop.f32.mrb[0].mxu0
    %v840 = vadd.f32 %v755, %v839
    %v841 = vpop.f32.mrb[0].mxu0
    %v842 = vpop.f32.mrb[0].mxu0
    %v843 = vadd.f32 %v755, %v842
    %v844 = vpop.f32.mrb[0].mxu0
    %845 = vmatprep.mubr.bf16.mxu0 0
    %846 = vmatmul.mubr.bf16.gmra.mrb[0].mxu0 %v731
    %v847 = vpop.f32.mrb[0].mxu0
    %v848 = vadd.f32 %v755, %v847
    %v849 = vpop.f32.mrb[0].mxu0
    %v850 = vpop.f32.mrb[0].mxu0
    %v851 = vadd.f32 %v755, %v850
    %v852 = vpop.f32.mrb[0].mxu0
    %853 = vmatprep.mubr.bf16.mxu0 0
    %854 = vmatmul.mubr.bf16.gmra.mrb[0].mxu0 %v732
    %v855 = vpop.f32.mrb[0].mxu0
    %v856 = vadd.f32 %v755, %v855
    %v857 = vpop.f32.mrb[0].mxu0
    %v858 = vpop.f32.mrb[0].mxu0
    %v859 = vadd.f32 %v755, %v858
    %v860 = vpop.f32.mrb[0].mxu0
    %861 = vmatprep.mubr.bf16.mxu0 0
    %862 = vmatmul.mubr.bf16.gmra.mrb[0].mxu0 %v733
    %v863 = vpop.f32.mrb[0].mxu0
    %v864 = vadd.f32 %v755, %v863
    %v865 = vpop.f32.mrb[0].mxu0
    %v866 = vpop.f32.mrb[0].mxu0
    %v867 = vadd.f32 %v755, %v866
    %v868 = vpop.f32.mrb[0].mxu0
    %869 = vdwg.mxu0
    %870 = vst [vmem:[#allocation10] sm:$0xff] %v840
    %871 = vst [vmem:[#allocation10 + $0x8] sm:$0xff] %v843
    %872 = vst [vmem:[#allocation10 + $0x10] sm:$0xff] %v848
    %873 = vst [vmem:[#allocation10 + $0x18] sm:$0xff] %v851
    %874 = vst [vmem:[#allocation10 + $0x20] sm:$0xff] %v856
    %875 = vst [vmem:[#allocation10 + $0x28] sm:$0xff] %v859
    %876 = vst [vmem:[#allocation10 + $0x30] sm:$0xff] %v864
    %877 = vst [vmem:[#allocation10 + $0x38] sm:$0xff] %v867
    // Predicated region
    $region46: #{tpu_custom_call.1} parent=1 // pred_check
      _
    $region47: #{tpu_custom_call.1} parent=1 // pred_check_branch
      %879 = sbr.rel (0) target = $region49
    $region48: #{tpu_custom_call.1} parent=1 // pred_region
      %s881 = ssub.s32 1024, 1024
      %882 = vsyncadd [#allocation4], %s881
      %s883 = sshll.u32 [#allocation10], 4
      %s884 = int_to_ptr.vmem [resolvable:$true] %s883
      %889 = dma.vmem_to_hbm [thread:$0]  %s884, 1024, %s7, [#allocation4], 128, 128, 8
    $region49: #{tpu_custom_call.1} parent=1 // pred_fallthru
      _
    // Predicated region
    $region50: #{tpu_custom_call.1} parent=1 // pred_check
      _
    $region51: #{tpu_custom_call.1} parent=1 // pred_check_branch
      %891 = sbr.rel (0) target = $region53
    $region52: #{tpu_custom_call.1} parent=1 // pred_region
      %892 = dma.done [#allocation4], 1024
    $region53: #{tpu_custom_call.1} parent=1 // pred_fallthru
      _
    %893 = vsyncpa [#allocation3], 1
    %894 = vsyncpa [#allocation6], 1
    %895 = vsyncpa [#allocation9], 1
    %896 = vsyncpa [#allocation4], 1

</llo_original>
